<compile_context>
chip_gen: v5e
topology: v5e:2x2
jax: 0.10.0
libtpu: 0.0.40
codegen_flags: <defaults>
</compile_context>

<pallas_src>
import jax
import jax.numpy as jnp
from jax import lax
from jax.experimental import pallas as pl
from jax.experimental.pallas import tpu as pltpu

HIDDEN = 32                    # per-branch hidden width
NUM_INPUTS = 14
NUM_OUTPUTS = 14
VALUE_COL = NUM_OUTPUTS        # value lane within each 16-lane output group
LANES = 128                    # fused hidden width (2 batch halves x 64)
IN_LANES = 32                  # packed input width  (half A [0,14), half B [16,30))
OUT_LANES = 32                 # packed output width (half A [0,15), half B [16,31))
N_PLANES = 5                   # 4 weight layers + 1 constants plane
_MAX_TB = 1024                 # max physical-row batch tile


# ----------------------------------------------------------------------------
# Kernel
# ----------------------------------------------------------------------------
def actor_critic_kernel(x_ref, w_ref, out_ref):
    """x_ref: (TB, 32) packed inputs; w_ref: (5, 128, 128) packed params;
    out_ref: (TB, 32): per 16-lane half -> mu in [0,14), value in lane 14."""
    col = lax.broadcasted_iota(jnp.int32, (1, LANES), 1)
    is_critic = (col & 63) < HIDDEN                 # PReLU lanes in each 64-block

    # layer 1: (TB, 32) @ (32, 128)  (only the first 32 rows of plane 0 are used)
    z = jnp.dot(x_ref[...], w_ref[0, 0:IN_LANES, :],
                preferred_element_type=jnp.float32) + w_ref[4, 0:1, :]
    alpha = w_ref[4, 4:5, :]
    h = jnp.where(is_critic, jnp.where(z > 0.0, z, alpha * z), jnp.tanh(z))

    # layers 2, 3: block-diagonal 128 -> 128
    for i in (1, 2):
        z = jnp.dot(h, w_ref[i], preferred_element_type=jnp.float32) \
            + w_ref[4, i:i + 1, :]
        alpha = w_ref[4, 4 + i:5 + i, :]
        h = jnp.where(is_critic, jnp.where(z > 0.0, z, alpha * z), jnp.tanh(z))

    # layer 4: actor head -> Tanh -> Threshold(0,0) on mu lanes; value linear.
    zf = jnp.dot(h, w_ref[3], preferred_element_type=jnp.float32) + w_ref[4, 3:4, :]
    z = zf[:, :OUT_LANES]
    col_out = lax.broadcasted_iota(jnp.int32, (1, OUT_LANES), 1)
    is_mu = (col_out & 15) < NUM_OUTPUTS
    out_ref[...] = jnp.where(is_mu, jnp.maximum(jnp.tanh(z), 0.0), z)


# ----------------------------------------------------------------------------
# Parameter packing (single lane-dense slab; call ONCE, outside the hot path)
# ----------------------------------------------------------------------------
def pack_params(params):
    cw1, cb1, cw2, cb2, cw3, cb3, cw4, cb4 = params["critic"]
    aw1, ab1, aw2, ab2, aw3, ab3, aw4, ab4 = params["actor"]
    a = params["prelu_alphas"]

    W = jnp.zeros((N_PLANES, LANES, LANES), jnp.float32)
    for blk in range(2):                 # duplicate onto both diagonal blocks
        ro = 16 * blk                    # input-row offset within the 32-lane input
        co = 64 * blk                    # fused-hidden lane offset
        oo = 16 * blk                    # output lane offset
        # layer 1: x(14) -> fused hidden(64)
        W = W.at[0, ro:ro + NUM_INPUTS, co:co + HIDDEN].set(cw1)
        W = W.at[0, ro:ro + NUM_INPUTS, co + HIDDEN:co + 2 * HIDDEN].set(aw1)
        # layers 2, 3: block-diagonal 64 -> 64 (hard zeros off-diagonal)
        W = W.at[1, co:co + HIDDEN, co:co + HIDDEN].set(cw2)
        W = W.at[1, co + HIDDEN:co + 2 * HIDDEN, co + HIDDEN:co + 2 * HIDDEN].set(aw2)
        W = W.at[2, co:co + HIDDEN, co:co + HIDDEN].set(cw3)
        W = W.at[2, co + HIDDEN:co + 2 * HIDDEN, co + HIDDEN:co + 2 * HIDDEN].set(aw3)
        # layer 4: actor head -> mu lanes, critic head -> value lane
        W = W.at[3, co + HIDDEN:co + 2 * HIDDEN, oo:oo + NUM_OUTPUTS].set(aw4)
        W = W.at[3, co:co + HIDDEN, oo + VALUE_COL:oo + VALUE_COL + 1].set(cw4)
        # constants plane: rows 0..2 hidden-layer fused biases
        W = W.at[4, 0, co:co + HIDDEN].set(cb1[0])
        W = W.at[4, 0, co + HIDDEN:co + 2 * HIDDEN].set(ab1[0])
        W = W.at[4, 1, co:co + HIDDEN].set(cb2[0])
        W = W.at[4, 1, co + HIDDEN:co + 2 * HIDDEN].set(ab2[0])
        W = W.at[4, 2, co:co + HIDDEN].set(cb3[0])
        W = W.at[4, 2, co + HIDDEN:co + 2 * HIDDEN].set(ab3[0])
        # row 3: output-layer bias
        W = W.at[4, 3, oo:oo + NUM_OUTPUTS].set(ab4[0])
        W = W.at[4, 3, oo + VALUE_COL:oo + VALUE_COL + 1].set(cb4[0])
        # rows 4..6: PReLU alphas (critic lanes only)
        W = W.at[4, 4, co:co + HIDDEN].set(a[0])
        W = W.at[4, 5, co:co + HIDDEN].set(a[1])
        W = W.at[4, 6, co:co + HIDDEN].set(a[2])
    return W


# ----------------------------------------------------------------------------
# Wrapper
# ----------------------------------------------------------------------------
def _round_up(n, m):
    return ((n + m - 1) // m) * m


def _choose_tile(rows):
    """Physical-row tile: multiple of 8, capped at _MAX_TB, and sized so that
    large batches get >= 2 grid programs (both v7x TCs) with minimal padding."""
    if rows <= 8:
        return 8
    n_prog = max(2, -(-rows // _MAX_TB))
    return min(_MAX_TB, _round_up(-(-rows // n_prog), 8))


@jax.jit
def actor_critic_forward(x, w_packed, log_std):
    B = x.shape[0]
    Bh = (B + 1) // 2                        # physical rows after 2-way lane packing
    TB = _choose_tile(Bh)
    R = _round_up(max(Bh, 1), TB)

    x = x.astype(jnp.float32)
    x_packed = jnp.zeros((R, IN_LANES), jnp.float32)
    x_packed = x_packed.at[:Bh, 0:NUM_INPUTS].set(x[:Bh])
    x_packed = x_packed.at[:B - Bh, 16:16 + NUM_INPUTS].set(x[Bh:])

    out = pl.pallas_call(
        actor_critic_kernel,
        out_shape=jax.ShapeDtypeStruct((R, OUT_LANES), jnp.float32),
        grid=(R // TB,),
        in_specs=[
            pl.BlockSpec((TB, IN_LANES), lambda i: (i, 0)),
            # Constant index_map -> param slab stays VMEM-resident across the grid.
            pl.BlockSpec((N_PLANES, LANES, LANES), lambda i: (0, 0, 0)),
        ],
        out_specs=pl.BlockSpec((TB, OUT_LANES), lambda i: (i, 0)),
        compiler_params=pltpu.CompilerParams(
            dimension_semantics=("parallel",),
            vmem_limit_bytes=32 * 1024 * 1024,
        ),
    )(x_packed, w_packed)

    mu = jnp.concatenate(
        [out[:Bh, 0:NUM_OUTPUTS], out[:B - Bh, 16:16 + NUM_OUTPUTS]], axis=0)
    value = jnp.concatenate(
        [out[:Bh, VALUE_COL:VALUE_COL + 1],
         out[:B - Bh, 16 + VALUE_COL:16 + VALUE_COL + 1]], axis=0)
    # Normal(mu, std*0.1): scale is x-independent -> computed outside the kernel.
    scale = jnp.broadcast_to(jnp.exp(log_std) * 0.1, (B, NUM_OUTPUTS))
    return mu, scale, value


# ----------------------------------------------------------------------------
# Init + pure-JAX reference
# ----------------------------------------------------------------------------
def init_params(key, std=0.0):
    """Mirrors init_weights: W ~ N(0, 0.01), b = 0.1; PReLU alpha = 0.25."""
    def linear(k, fan_in, fan_out):
        w = 0.01 * jax.random.normal(k, (fan_in, fan_out), jnp.float32)
        b = jnp.full((1, fan_out), 0.1, jnp.float32)
        return w, b

    keys = jax.random.split(key, 8)
    cw1, cb1 = linear(keys[0], NUM_INPUTS, HIDDEN)
    cw2, cb2 = linear(keys[1], HIDDEN, HIDDEN)
    cw3, cb3 = linear(keys[2], HIDDEN, HIDDEN)
    cw4, cb4 = linear(keys[3], HIDDEN, 1)
    aw1, ab1 = linear(keys[4], NUM_INPUTS, HIDDEN)
    aw2, ab2 = linear(keys[5], HIDDEN, HIDDEN)
    aw3, ab3 = linear(keys[6], HIDDEN, HIDDEN)
    aw4, ab4 = linear(keys[7], HIDDEN, NUM_OUTPUTS)

    return {
        "prelu_alphas": jnp.full((3,), 0.25, jnp.float32),
        "critic": (cw1, cb1, cw2, cb2, cw3, cb3, cw4, cb4),
        "actor": (aw1, ab1, aw2, ab2, aw3, ab3, aw4, ab4),
        "log_std": jnp.full((1, NUM_OUTPUTS), std, jnp.float32),
    }


def reference_forward(x, params):
    a = params["prelu_alphas"]
    cw1, cb1, cw2, cb2, cw3, cb3, cw4, cb4 = params["critic"]
    aw1, ab1, aw2, ab2, aw3, ab3, aw4, ab4 = params["actor"]

    def prelu(h, alpha):
        return jnp.maximum(h, 0.0) + alpha * jnp.minimum(h, 0.0)

    h = prelu(x @ cw1 + cb1, a[0])
    h = prelu(h @ cw2 + cb2, a[1])
    h = prelu(h @ cw3 + cb3, a[2])
    value = h @ cw4 + cb4

    g = jnp.tanh(x @ aw1 + ab1)
    g = jnp.tanh(g @ aw2 + ab2)
    g = jnp.tanh(g @ aw3 + ab3)
    g = jnp.tanh(g @ aw4 + ab4)
    mu = jnp.where(g > 0.0, g, 0.0)                       # nn.Threshold(0.0, 0.0)
    scale = jnp.broadcast_to(jnp.exp(params["log_std"]) * 0.1, mu.shape)
    return mu, scale, value


if __name__ == "__main__":
    key = jax.random.PRNGKey(0)
    pkey, xkey = jax.random.split(key)

    params = init_params(pkey, std=0.0)
    w_packed = pack_params(params)           # built once, outside the per-call jit

    B = 8
    x = jax.random.normal(xkey, (B, NUM_INPUTS), jnp.float32)

    mu, scale, value = actor_critic_forward(x, w_packed, params["log_std"])
    jax.block_until_ready((mu, scale, value))

    mu_ref, scale_ref, value_ref = reference_forward(x, params)
    assert jnp.allclose(mu, mu_ref, atol=1e-5), "mu mismatch"
    assert jnp.allclose(scale, scale_ref, atol=1e-6), "scale mismatch"
    assert jnp.allclose(value, value_ref, atol=1e-5), "value mismatch"

    # TODO(synk): the torch.distributions.Normal object itself is host-side glue;
    # the kernel returns its parameters (mu, scale) instead.
    print("KERNEL_OK")
</pallas_src>

<mosaic_0001>
module attributes {stable_mosaic.version = 11 : i64} {
  func.func @actor_critic_kernel(%arg0: i32, %arg1: memref<8x32xf32, #tpu.memory_space<vmem>>, %arg2: memref<5x128x128xf32, #tpu.memory_space<vmem>>, %arg3: memref<8x32xf32, #tpu.memory_space<vmem>>) attributes {dimension_semantics = [#tpu.dimension_semantics<parallel>], iteration_bounds = array<i64: 1>, scalar_prefetch = 0 : i64, scratch_operands = 0 : i64, tpu.core_type = #tpu.core_type<tc>, window_params = [{transform_indices = @transform_0, window_bounds = array<i64: 8, 32>}, {pipeline_mode = #tpu.pipeline_mode<synchronous>, transform_indices = @transform_1, window_bounds = array<i64: 5, 128, 128>}, {transform_indices = @transform_2, window_bounds = array<i64: 8, 32>}]} {
    %0 = tpu.iota {dimensions = array<i32: 1>} : vector<1x128xi32>
    %c63_i32 = arith.constant 63 : i32
    %1 = vector.broadcast %c63_i32 : i32 to vector<1x128xi32>
    %2 = arith.andi %0, %1 : vector<1x128xi32>
    %c32_i32 = arith.constant 32 : i32
    %3 = vector.broadcast %c32_i32 : i32 to vector<1x128xi32>
    %4 = arith.cmpi slt, %2, %3 : vector<1x128xi32>
    %c0 = arith.constant 0 : index
    %c0_0 = arith.constant 0 : index
    %5 = vector.load %arg1[%c0, %c0_0] : memref<8x32xf32, #tpu.memory_space<vmem>>, vector<8x32xf32>
    %c0_1 = arith.constant 0 : index
    %c0_2 = arith.constant 0 : index
    %c0_3 = arith.constant 0 : index
    %6 = vector.load %arg2[%c0_1, %c0_2, %c0_3] : memref<5x128x128xf32, #tpu.memory_space<vmem>>, vector<1x32x128xf32>
    %7 = vector.shape_cast %6 : vector<1x32x128xf32> to vector<32x128xf32>
    %cst = arith.constant dense<0.000000e+00> : vector<8x128xf32>
    %8 = tpu.matmul %5, %7, %cst {dimension_numbers = #tpu.dot_dimension_numbers<[1], [0], [0], [1], [0, 0, 1, 1], [], []>} : vector<8x32xf32>, vector<32x128xf32>, vector<8x128xf32> -> vector<8x128xf32>
    %c4 = arith.constant 4 : index
    %c0_4 = arith.constant 0 : index
    %c0_5 = arith.constant 0 : index
    %9 = vector.load %arg2[%c4, %c0_4, %c0_5] : memref<5x128x128xf32, #tpu.memory_space<vmem>>, vector<1x1x128xf32>
    %10 = vector.shape_cast %9 : vector<1x1x128xf32> to vector<1x128xf32>
    %11 = vector.broadcast %10 : vector<1x128xf32> to vector<8x128xf32>
    %12 = arith.addf %8, %11 : vector<8x128xf32>
    %c4_6 = arith.constant 4 : index
    %c4_7 = arith.constant 4 : index
    %c0_8 = arith.constant 0 : index
    %13 = vector.load %arg2[%c4_6, %c4_7, %c0_8] : memref<5x128x128xf32, #tpu.memory_space<vmem>>, vector<1x1x128xf32>
    %14 = vector.shape_cast %13 : vector<1x1x128xf32> to vector<1x128xf32>
    %cst_9 = arith.constant 0.000000e+00 : f32
    %15 = vector.broadcast %cst_9 : f32 to vector<8x128xf32>
    %16 = arith.cmpf ogt, %12, %15 : vector<8x128xf32>
    %17 = vector.broadcast %14 : vector<1x128xf32> to vector<8x128xf32>
    %18 = arith.mulf %17, %12 : vector<8x128xf32>
    %19 = arith.select %16, %12, %18 : vector<8x128xi1>, vector<8x128xf32>
    %20 = math.tanh %12 : vector<8x128xf32>
    %21 = vector.shape_cast %4 : vector<1x128xi1> to vector<1x128xi1>
    %22 = vector.broadcast %21 : vector<1x128xi1> to vector<8x128xi1>
    %23 = arith.select %22, %19, %20 : vector<8x128xi1>, vector<8x128xf32>
    %c1 = arith.constant 1 : index
    %c0_10 = arith.constant 0 : index
    %c0_11 = arith.constant 0 : index
    %24 = vector.load %arg2[%c1, %c0_10, %c0_11] : memref<5x128x128xf32, #tpu.memory_space<vmem>>, vector<1x128x128xf32>
    %25 = vector.shape_cast %24 : vector<1x128x128xf32> to vector<128x128xf32>
    %cst_12 = arith.constant dense<0.000000e+00> : vector<8x128xf32>
    %26 = tpu.matmul %23, %25, %cst_12 {dimension_numbers = #tpu.dot_dimension_numbers<[1], [0], [0], [1], [0, 0, 1, 1], [], []>} : vector<8x128xf32>, vector<128x128xf32>, vector<8x128xf32> -> vector<8x128xf32>
    %c4_13 = arith.constant 4 : index
    %c1_14 = arith.constant 1 : index
    %c0_15 = arith.constant 0 : index
    %27 = vector.load %arg2[%c4_13, %c1_14, %c0_15] : memref<5x128x128xf32, #tpu.memory_space<vmem>>, vector<1x1x128xf32>
    %28 = vector.shape_cast %27 : vector<1x1x128xf32> to vector<1x128xf32>
    %29 = vector.broadcast %28 : vector<1x128xf32> to vector<8x128xf32>
    %30 = arith.addf %26, %29 : vector<8x128xf32>
    %c4_16 = arith.constant 4 : index
    %c5 = arith.constant 5 : index
    %c0_17 = arith.constant 0 : index
    %31 = vector.load %arg2[%c4_16, %c5, %c0_17] : memref<5x128x128xf32, #tpu.memory_space<vmem>>, vector<1x1x128xf32>
    %32 = vector.shape_cast %31 : vector<1x1x128xf32> to vector<1x128xf32>
    %cst_18 = arith.constant 0.000000e+00 : f32
    %33 = vector.broadcast %cst_18 : f32 to vector<8x128xf32>
    %34 = arith.cmpf ogt, %30, %33 : vector<8x128xf32>
    %35 = vector.broadcast %32 : vector<1x128xf32> to vector<8x128xf32>
    %36 = arith.mulf %35, %30 : vector<8x128xf32>
    %37 = arith.select %34, %30, %36 : vector<8x128xi1>, vector<8x128xf32>
    %38 = math.tanh %30 : vector<8x128xf32>
    %39 = vector.shape_cast %4 : vector<1x128xi1> to vector<1x128xi1>
    %40 = vector.broadcast %39 : vector<1x128xi1> to vector<8x128xi1>
    %41 = arith.select %40, %37, %38 : vector<8x128xi1>, vector<8x128xf32>
    %c2 = arith.constant 2 : index
    %c0_19 = arith.constant 0 : index
    %c0_20 = arith.constant 0 : index
    %42 = vector.load %arg2[%c2, %c0_19, %c0_20] : memref<5x128x128xf32, #tpu.memory_space<vmem>>, vector<1x128x128xf32>
    %43 = vector.shape_cast %42 : vector<1x128x128xf32> to vector<128x128xf32>
    %cst_21 = arith.constant dense<0.000000e+00> : vector<8x128xf32>
    %44 = tpu.matmul %41, %43, %cst_21 {dimension_numbers = #tpu.dot_dimension_numbers<[1], [0], [0], [1], [0, 0, 1, 1], [], []>} : vector<8x128xf32>, vector<128x128xf32>, vector<8x128xf32> -> vector<8x128xf32>
    %c4_22 = arith.constant 4 : index
    %c2_23 = arith.constant 2 : index
    %c0_24 = arith.constant 0 : index
    %45 = vector.load %arg2[%c4_22, %c2_23, %c0_24] : memref<5x128x128xf32, #tpu.memory_space<vmem>>, vector<1x1x128xf32>
    %46 = vector.shape_cast %45 : vector<1x1x128xf32> to vector<1x128xf32>
    %47 = vector.broadcast %46 : vector<1x128xf32> to vector<8x128xf32>
    %48 = arith.addf %44, %47 : vector<8x128xf32>
    %c4_25 = arith.constant 4 : index
    %c6 = arith.constant 6 : index
    %c0_26 = arith.constant 0 : index
    %49 = vector.load %arg2[%c4_25, %c6, %c0_26] : memref<5x128x128xf32, #tpu.memory_space<vmem>>, vector<1x1x128xf32>
    %50 = vector.shape_cast %49 : vector<1x1x128xf32> to vector<1x128xf32>
    %cst_27 = arith.constant 0.000000e+00 : f32
    %51 = vector.broadcast %cst_27 : f32 to vector<8x128xf32>
    %52 = arith.cmpf ogt, %48, %51 : vector<8x128xf32>
    %53 = vector.broadcast %50 : vector<1x128xf32> to vector<8x128xf32>
    %54 = arith.mulf %53, %48 : vector<8x128xf32>
    %55 = arith.select %52, %48, %54 : vector<8x128xi1>, vector<8x128xf32>
    %56 = math.tanh %48 : vector<8x128xf32>
    %57 = vector.shape_cast %4 : vector<1x128xi1> to vector<1x128xi1>
    %58 = vector.broadcast %57 : vector<1x128xi1> to vector<8x128xi1>
    %59 = arith.select %58, %55, %56 : vector<8x128xi1>, vector<8x128xf32>
    %c3 = arith.constant 3 : index
    %c0_28 = arith.constant 0 : index
    %c0_29 = arith.constant 0 : index
    %60 = vector.load %arg2[%c3, %c0_28, %c0_29] : memref<5x128x128xf32, #tpu.memory_space<vmem>>, vector<1x128x128xf32>
    %61 = vector.shape_cast %60 : vector<1x128x128xf32> to vector<128x128xf32>
    %cst_30 = arith.constant dense<0.000000e+00> : vector<8x128xf32>
    %62 = tpu.matmul %59, %61, %cst_30 {dimension_numbers = #tpu.dot_dimension_numbers<[1], [0], [0], [1], [0, 0, 1, 1], [], []>} : vector<8x128xf32>, vector<128x128xf32>, vector<8x128xf32> -> vector<8x128xf32>
    %c4_31 = arith.constant 4 : index
    %c3_32 = arith.constant 3 : index
    %c0_33 = arith.constant 0 : index
    %63 = vector.load %arg2[%c4_31, %c3_32, %c0_33] : memref<5x128x128xf32, #tpu.memory_space<vmem>>, vector<1x1x128xf32>
    %64 = vector.shape_cast %63 : vector<1x1x128xf32> to vector<1x128xf32>
    %65 = vector.broadcast %64 : vector<1x128xf32> to vector<8x128xf32>
    %66 = arith.addf %62, %65 : vector<8x128xf32>
    %67 = vector.extract_strided_slice %66 {offsets = [0, 0], sizes = [8, 32], strides = [1, 1]} : vector<8x128xf32> to vector<8x32xf32>
    %68 = tpu.iota {dimensions = array<i32: 1>} : vector<1x32xi32>
    %c15_i32 = arith.constant 15 : i32
    %69 = vector.broadcast %c15_i32 : i32 to vector<1x32xi32>
    %70 = arith.andi %68, %69 : vector<1x32xi32>
    %c14_i32 = arith.constant 14 : i32
    %71 = vector.broadcast %c14_i32 : i32 to vector<1x32xi32>
    %72 = arith.cmpi slt, %70, %71 : vector<1x32xi32>
    %73 = math.tanh %67 : vector<8x32xf32>
    %cst_34 = arith.constant 0.000000e+00 : f32
    %74 = vector.broadcast %cst_34 : f32 to vector<8x32xf32>
    %75 = arith.maximumf %73, %74 : vector<8x32xf32>
    %76 = vector.shape_cast %72 : vector<1x32xi1> to vector<1x32xi1>
    %77 = vector.broadcast %76 : vector<1x32xi1> to vector<8x32xi1>
    %78 = arith.select %77, %75, %67 : vector<8x32xi1>, vector<8x32xf32>
    %c0_35 = arith.constant 0 : index
    %c0_36 = arith.constant 0 : index
    %79 = vector.load %arg3[%c0_35, %c0_36] : memref<8x32xf32, #tpu.memory_space<vmem>>, vector<8x32xf32>
    tpu.vector_store %arg3[%c0_35, %c0_36], %78 {strides = array<i32>} : memref<8x32xf32, #tpu.memory_space<vmem>>, vector<8x32xf32>,
    return
  }
  func.func @transform_0(%arg0: i32) -> (i32, i32) {
    %c0_i32 = arith.constant 0 : i32
    %c0_i32_0 = arith.constant 0 : i32
    return %arg0, %c0_i32 : i32, i32
  }
  func.func @transform_1(%arg0: i32) -> (i32, i32, i32) {
    %c0_i32 = arith.constant 0 : i32
    %c0_i32_0 = arith.constant 0 : i32
    %c0_i32_1 = arith.constant 0 : i32
    %c0_i32_2 = arith.constant 0 : i32
    return %c0_i32, %c0_i32_0, %c0_i32_1 : i32, i32, i32
  }
  func.func @transform_2(%arg0: i32) -> (i32, i32) {
    %c0_i32 = arith.constant 0 : i32
    %c0_i32_0 = arith.constant 0 : i32
    return %arg0, %c0_i32 : i32, i32
  }
}

</mosaic_0001>

<llo_original>
// kernel: actor_critic_forward.1
$region0: #{actor_critic_forward.1}
  #allocation0 [shape = 'u32[]', space=smem, size = 0x4, offset = 0x4, fixed_abs, tag = 'smem constant byte address 0x4 - core index']
  #allocation1 [shape = 'u32[72,128]{1,0:T(1,128)}', space=vmem, size = 0x9000, scoped, tag = 'internal scratch']
  %s0 = inlined_call_operand.vmem [shape: f32[8,32], index: 0, kind: input, shape index: {}]
  %s1 = inlined_call_operand.hbm [shape: f32[5,128,128], index: 1, kind: input, shape index: {}]
  %s2 = inlined_call_operand.vmem [shape: f32[8,32], index: 2, kind: output, shape index: {}]
  %s3 = sld [smem:[#allocation0]]
  $region22: #{actor_critic_forward.1} parent=0
    _
  %s5 = ssub.s32 1, %s3
  %s6 = scalar_select 0, %s5, %s3
  $region1: #{actor_critic_forward.1} parent=0
    #allocation2 [shape = 'u8[327680]{0}', space=vmem, size = 0x50000, scoped, tag = 'input window, operand 1, single buffered']
    #allocation3 [shape = 's32[1]{0}', space=sflag, size = 0x4, scoped, tag = 'scoped memory for actor_critic_forward.1']
    %7 = vsyncpa [#allocation3], 0
    // Predicated region
    $region2: #{actor_critic_forward.1} parent=1 // pred_check
      _
    $region3: #{actor_critic_forward.1} parent=1 // pred_check_branch
      %9 = sbr.rel (0) target = $region5
    $region4: #{actor_critic_forward.1} parent=1 // pred_region
      _
    $region5: #{actor_critic_forward.1} parent=1 // pred_fallthru
      _
    // Predicated region
    $region6: #{actor_critic_forward.1} parent=1 // pred_check
      _
    $region7: #{actor_critic_forward.1} parent=1 // pred_check_branch
      %11 = sbr.rel (0) target = $region9
    $region8: #{actor_critic_forward.1} parent=1 // pred_region
      %13 = vsyncadd [#allocation3], 0
      %s14 = sshll.u32 %s1, 4
      %s15 = int_to_ptr.hbm [resolvable:$true] %s14
      %s16 = sshll.u32 [#allocation2], 4
      %s17 = int_to_ptr.vmem [resolvable:$true] %s16
      %22 = dma.hbm_to_vmem [thread:$0]  %s15, 10240, %s17, [#allocation3], 128, 128, 8
    $region9: #{actor_critic_forward.1} parent=1 // pred_fallthru
      _
    // Predicated region
    $region10: #{actor_critic_forward.1} parent=1 // pred_check
      _
    $region11: #{actor_critic_forward.1} parent=1 // pred_check_branch
      %24 = sbr.rel (0) target = $region13
    $region12: #{actor_critic_forward.1} parent=1 // pred_region
      %26 = dma.done [#allocation3], 10240
    $region13: #{actor_critic_forward.1} parent=1 // pred_fallthru
      _
    %v27 = vlaneseq
    %v28 = vand.u32 %v27, 127
    %v29 = vand.u32 %v28, 63
    %vm30 = vcmp.lt.s32.totalorder %v29, 32
    %v31 = vld [vmem:[%s0] sm:$0xff]
    %v32 = vld [vmem:[#allocation2] sm:$0xff]
    %v33 = vld [vmem:[#allocation2 + $0x8] sm:$0xff]
    %v34 = vld [vmem:[#allocation2 + $0x10] sm:$0xff]
    %v35 = vld [vmem:[#allocation2 + $0x18] sm:$0xff]
    %s36 = scalar_lea.vmem [#allocation2], 512
    %v37 = vld [vmem:[%s36] sm:$0x1]
    %v38 = vperm.slane %v37, 0
    %vm39 = vcmask 261120
    %v41 = vsel %vm39, %v31, 0
    %43 = vmatpush.msra.mxu0 0.0
    %44 = vmatpush.msra.mxu0 0.0
    %45 = vmatpush.msra.mxu0 0.0
    %46 = vmatpush.msra.mxu0 0.0
    %47 = vmatpush.msra.mxu0 0.0
    %48 = vmatpush.msra.mxu0 0.0
    %49 = vmatpush.msra.mxu0 0.0
    %50 = vmatpush.msra.mxu0 0.0
    %51 = vmatpush.msra.mxu0 0.0
    %52 = vmatpush.msra.mxu0 0.0
    %53 = vmatpush.msra.mxu0 0.0
    %54 = vmatpush.msra.mxu0 0.0
    %55 = vmatpush.msra.mxu0 %v35
    %56 = vmatpush.msra.mxu0 %v34
    %57 = vmatpush.msra.mxu0 %v33
    %58 = vmatpush.msra.mxu0 %v32
    %59 = vmatmul.f32.gmra.mxu0 %v41
    %v60 = vpop.f32.mrf.mxu0
    %v61 = vadd.f32 %v38, %v60
    %62 = vdwg.mxu0
    %v63 = vld [vmem:[%s36 + $0x4] sm:$0x1]
    %vm64 = vcmp.gt.f32.partialorder %v61, 0.0
    %v65 = vperm.slane %v63, 0
    %v66 = vmul.f32 %v65, %v61
    %v67 = vsel %vm64, %v61, %v66
    %v68 = vtanh.pop %v61
    %v69 = vsel %vm30, 1, 0
    %vm70 = vcmp.eq.s32.totalorder %v69, 1
    %v71 = vsel %vm70, %v67, %v68
    %s72 = scalar_lea.vmem [#allocation2], 128
    %v73 = vld [vmem:[%s72] sm:$0xff]
    %v74 = vld [vmem:[%s72 + $0x8] sm:$0xff]
    %v75 = vld [vmem:[%s72 + $0x10] sm:$0xff]
    %v76 = vld [vmem:[%s72 + $0x18] sm:$0xff]
    %v77 = vld [vmem:[%s72 + $0x20] sm:$0xff]
    %v78 = vld [vmem:[%s72 + $0x28] sm:$0xff]
    %v79 = vld [vmem:[%s72 + $0x30] sm:$0xff]
    %v80 = vld [vmem:[%s72 + $0x38] sm:$0xff]
    %v81 = vld [vmem:[%s72 + $0x40] sm:$0xff]
    %v82 = vld [vmem:[%s72 + $0x48] sm:$0xff]
    %v83 = vld [vmem:[%s72 + $0x50] sm:$0xff]
    %v84 = vld [vmem:[%s72 + $0x58] sm:$0xff]
    %v85 = vld [vmem:[%s72 + $0x60] sm:$0xff]
    %v86 = vld [vmem:[%s72 + $0x68] sm:$0xff]
    %v87 = vld [vmem:[%s72 + $0x70] sm:$0xff]
    %v88 = vld [vmem:[%s72 + $0x78] sm:$0xff]
    %v89 = vld [vmem:[%s36 + $0x1] sm:$0x1]
    %v90 = vperm.slane %v89, 0
    %91 = vmatpush.msra.mxu0 %v88
    %92 = vmatpush.msra.mxu0 %v87
    %93 = vmatpush.msra.mxu0 %v86
    %94 = vmatpush.msra.mxu0 %v85
    %95 = vmatpush.msra.mxu0 %v84
    %96 = vmatpush.msra.mxu0 %v83
    %97 = vmatpush.msra.mxu0 %v82
    %98 = vmatpush.msra.mxu0 %v81
    %99 = vmatpush.msra.mxu0 %v80
    %100 = vmatpush.msra.mxu0 %v79
    %101 = vmatpush.msra.mxu0 %v78
    %102 = vmatpush.msra.mxu0 %v77
    %103 = vmatpush.msra.mxu0 %v76
    %104 = vmatpush.msra.mxu0 %v75
    %105 = vmatpush.msra.mxu0 %v74
    %106 = vmatpush.msra.mxu0 %v73
    %107 = vmatmul.f32.gmra.mxu0 %v71
    %v108 = vpop.f32.mrf.mxu0
    %v109 = vadd.f32 %v90, %v108
    %110 = vdwg.mxu0
    %v111 = vld [vmem:[%s36 + $0x5] sm:$0x1]
    %vm112 = vcmp.gt.f32.partialorder %v109, 0.0
    %v113 = vperm.slane %v111, 0
    %v114 = vmul.f32 %v113, %v109
    %v115 = vsel %vm112, %v109, %v114
    %v116 = vtanh.pop %v109
    %v117 = vsel %vm70, %v115, %v116
    %s118 = scalar_lea.vmem [#allocation2], 256
    %v119 = vld [vmem:[%s118] sm:$0xff]
    %v120 = vld [vmem:[%s118 + $0x8] sm:$0xff]
    %v121 = vld [vmem:[%s118 + $0x10] sm:$0xff]
    %v122 = vld [vmem:[%s118 + $0x18] sm:$0xff]
    %v123 = vld [vmem:[%s118 + $0x20] sm:$0xff]
    %v124 = vld [vmem:[%s118 + $0x28] sm:$0xff]
    %v125 = vld [vmem:[%s118 + $0x30] sm:$0xff]
    %v126 = vld [vmem:[%s118 + $0x38] sm:$0xff]
    %v127 = vld [vmem:[%s118 + $0x40] sm:$0xff]
    %v128 = vld [vmem:[%s118 + $0x48] sm:$0xff]
    %v129 = vld [vmem:[%s118 + $0x50] sm:$0xff]
    %v130 = vld [vmem:[%s118 + $0x58] sm:$0xff]
    %v131 = vld [vmem:[%s118 + $0x60] sm:$0xff]
    %v132 = vld [vmem:[%s118 + $0x68] sm:$0xff]
    %v133 = vld [vmem:[%s118 + $0x70] sm:$0xff]
    %v134 = vld [vmem:[%s118 + $0x78] sm:$0xff]
    %v135 = vld [vmem:[%s36 + $0x2] sm:$0x1]
    %v136 = vperm.slane %v135, 0
    %137 = vmatpush.msra.mxu0 %v134
    %138 = vmatpush.msra.mxu0 %v133
    %139 = vmatpush.msra.mxu0 %v132
    %140 = vmatpush.msra.mxu0 %v131
    %141 = vmatpush.msra.mxu0 %v130
    %142 = vmatpush.msra.mxu0 %v129
    %143 = vmatpush.msra.mxu0 %v128
    %144 = vmatpush.msra.mxu0 %v127
    %145 = vmatpush.msra.mxu0 %v126
    %146 = vmatpush.msra.mxu0 %v125
    %147 = vmatpush.msra.mxu0 %v124
    %148 = vmatpush.msra.mxu0 %v123
    %149 = vmatpush.msra.mxu0 %v122
    %150 = vmatpush.msra.mxu0 %v121
    %151 = vmatpush.msra.mxu0 %v120
    %152 = vmatpush.msra.mxu0 %v119
    %153 = vmatmul.f32.gmra.mxu0 %v117
    %v154 = vpop.f32.mrf.mxu0
    %v155 = vadd.f32 %v136, %v154
    %156 = vdwg.mxu0
    %v157 = vld [vmem:[%s36 + $0x6] sm:$0x1]
    %vm158 = vcmp.gt.f32.partialorder %v155, 0.0
    %v159 = vperm.slane %v157, 0
    %v160 = vmul.f32 %v159, %v155
    %v161 = vsel %vm158, %v155, %v160
    %v162 = vtanh.pop %v155
    %v163 = vsel %vm70, %v161, %v162
    %s164 = scalar_lea.vmem [#allocation2], 384
    %v165 = vld [vmem:[%s164] sm:$0xff]
    %v166 = vld [vmem:[%s164 + $0x8] sm:$0xff]
    %v167 = vld [vmem:[%s164 + $0x10] sm:$0xff]
    %v168 = vld [vmem:[%s164 + $0x18] sm:$0xff]
    %v169 = vld [vmem:[%s164 + $0x20] sm:$0xff]
    %v170 = vld [vmem:[%s164 + $0x28] sm:$0xff]
    %v171 = vld [vmem:[%s164 + $0x30] sm:$0xff]
    %v172 = vld [vmem:[%s164 + $0x38] sm:$0xff]
    %v173 = vld [vmem:[%s164 + $0x40] sm:$0xff]
    %v174 = vld [vmem:[%s164 + $0x48] sm:$0xff]
    %v175 = vld [vmem:[%s164 + $0x50] sm:$0xff]
    %v176 = vld [vmem:[%s164 + $0x58] sm:$0xff]
    %v177 = vld [vmem:[%s164 + $0x60] sm:$0xff]
    %v178 = vld [vmem:[%s164 + $0x68] sm:$0xff]
    %v179 = vld [vmem:[%s164 + $0x70] sm:$0xff]
    %v180 = vld [vmem:[%s164 + $0x78] sm:$0xff]
    %v181 = vld [vmem:[%s36 + $0x3] sm:$0x1]
    %v182 = vperm.slane %v181, 0
    %183 = vmatpush.msra.mxu0 %v180
    %184 = vmatpush.msra.mxu0 %v179
    %185 = vmatpush.msra.mxu0 %v178
    %186 = vmatpush.msra.mxu0 %v177
    %187 = vmatpush.msra.mxu0 %v176
    %188 = vmatpush.msra.mxu0 %v175
    %189 = vmatpush.msra.mxu0 %v174
    %190 = vmatpush.msra.mxu0 %v173
    %191 = vmatpush.msra.mxu0 %v172
    %192 = vmatpush.msra.mxu0 %v171
    %193 = vmatpush.msra.mxu0 %v170
    %194 = vmatpush.msra.mxu0 %v169
    %195 = vmatpush.msra.mxu0 %v168
    %196 = vmatpush.msra.mxu0 %v167
    %197 = vmatpush.msra.mxu0 %v166
    %198 = vmatpush.msra.mxu0 %v165
    %199 = vmatmul.f32.gmra.mxu0 %v163
    %v200 = vpop.f32.mrf.mxu0
    %v201 = vadd.f32 %v182, %v200
    %202 = vdwg.mxu0
    %v203 = vand.u32 %v28, 15
    %vm204 = vcmp.lt.s32.totalorder %v203, 14
    %v205 = vtanh.pop %v201
    %v206 = vmax.f32 %v205, 0.0
    %v207 = vsel %vm204, 1, 0
    %vm208 = vcmp.eq.s32.totalorder %v207, 1
    %v209 = vsel %vm208, %v206, %v201
    %210 = vst.msk [vmem:[%s2] sm:$0xff] %vm39, %v209
    // Predicated region
    $region14: #{actor_critic_forward.1} parent=1 // pred_check
      _
    $region15: #{actor_critic_forward.1} parent=1 // pred_check_branch
      %212 = sbr.rel (0) target = $region17
    $region16: #{actor_critic_forward.1} parent=1 // pred_region
      _
    $region17: #{actor_critic_forward.1} parent=1 // pred_fallthru
      _
    // Predicated region
    $region18: #{actor_critic_forward.1} parent=1 // pred_check
      _
    $region19: #{actor_critic_forward.1} parent=1 // pred_check_branch
      %214 = sbr.rel (0) target = $region21
    $region20: #{actor_critic_forward.1} parent=1 // pred_region
      _
    $region21: #{actor_critic_forward.1} parent=1 // pred_fallthru
      _
    %215 = vsyncpa [#allocation3], 1

</llo_original>
